<compile_context>
chip_gen: v7x
topology: tpu7x:2x2x1
jax: 0.10.0
libtpu: 0.0.40
codegen_flags: <defaults>
</compile_context>

<pallas_src>
import functools

import jax
import jax.numpy as jnp
from jax.experimental import pallas as pl
from jax.experimental.pallas import tpu as pltpu

_SUBLANE = 8  # f32 sublane granularity for the batch (row) tiling


def _round_up(n, m):
    return (n + m - 1) // m * m


def net_kernel(x_ref, w1_ref, b1_ref, w2_ref, b2_ref, o_ref, *, compute_dtype):
    """Fused hidden + output layer for one (bm, F) activation tile."""
    x = x_ref[...].astype(compute_dtype)                    # cast in VMEM, not HBM
    h = jnp.dot(x, w1_ref[...], preferred_element_type=jnp.float32)
    h = jnp.maximum(h + b1_ref[...], 0.0)                   # f32 bias + ReLU (VPU)
    y = jnp.dot(h.astype(w2_ref.dtype), w2_ref[...],
                preferred_element_type=jnp.float32)
    o_ref[...] = (y + b2_ref[...]).astype(o_ref.dtype)


def prepare_params(w1, b1, w2, b2, compute_dtype=jnp.bfloat16):
    """One-time weight/bias cast, hoisted out of the per-forward path.

    Weights are stored (in, out) — i.e. transposed vs. torch.nn.Linear — so
    both matmuls hit the MXU with no in-kernel transpose.
    """
    w1 = jnp.asarray(w1).astype(compute_dtype)               # (F, H)
    w2 = jnp.asarray(w2).astype(compute_dtype)               # (H, O)
    b1 = jnp.asarray(b1).reshape(1, -1).astype(jnp.float32)  # (1, H)
    b2 = jnp.asarray(b2).reshape(1, -1).astype(jnp.float32)  # (1, O)
    return w1, b1, w2, b2


@functools.partial(jax.jit, static_argnames=("bm",))
def net_forward(x, w1, b1, w2, b2, *, bm=None):
    """relu(x @ w1 + b1) @ w2 + b2 with prepared params (see prepare_params)."""
    B, F = x.shape
    H = w1.shape[1]
    O = w2.shape[1]
    compute_dtype = w1.dtype

    # Batch tile: large tiles amortize per-grid-step overhead; keep multiple
    # steps for big batches so the "parallel" axis can shard across v7x's
    # two TensorCores.  Rows are f32 in HBM -> 8-row sublane granularity.
    B_r = _round_up(B, _SUBLANE)
    if bm is None:
        bm = min(4096, max(1024, B_r // 4))
    bm = _round_up(max(_SUBLANE, min(bm, B_r)), _SUBLANE)
    B_p = _round_up(B, bm)

    # Pad the batch only if needed (no feature/lane padding at all).
    x_p = x if B_p == B else jnp.pad(x, ((0, B_p - B), (0, 0)))
    grid = (B_p // bm,)

    cd_bytes = jnp.dtype(compute_dtype).itemsize
    weight_bytes = (F * H + H * O) * cd_bytes + (H + O) * 4
    step_bytes = bm * (F * x.dtype.itemsize + O * 4)
    # Pallas double-buffers every BlockSpec'd operand.
    vmem_budget = 2 * (weight_bytes + step_bytes)
    vmem_limit = None
    if vmem_budget > (24 << 20):                 # only override when needed
        try:
            cap = int(pltpu.get_tpu_info().vmem_capacity_bytes)
        except Exception:  # pragma: no cover - conservative fallback
            cap = 64 << 20                       # v7x per-TC VMEM floor
        vmem_limit = int(min(vmem_budget + (4 << 20), (cap * 3) // 4))

    cost = pl.CostEstimate(
        flops=2 * B_p * (F * H + H * O),
        transcendentals=0,
        bytes_accessed=int(B_p * F * x.dtype.itemsize
                           + weight_bytes
                           + B_p * O * 4),
    )

    kernel = functools.partial(net_kernel, compute_dtype=compute_dtype)
    out = pl.pallas_call(
        kernel,
        out_shape=jax.ShapeDtypeStruct((B_p, O), jnp.float32),
        grid_spec=pltpu.PrefetchScalarGridSpec(
            num_scalar_prefetch=0,
            grid=grid,
            in_specs=[
                pl.BlockSpec((bm, F), lambda i: (i, 0)),   # activation tile
                pl.BlockSpec((F, H), lambda i: (0, 0)),    # W1 (VMEM-resident)
                pl.BlockSpec((1, H), lambda i: (0, 0)),    # b1 (resident)
                pl.BlockSpec((H, O), lambda i: (0, 0)),    # W2 (resident)
                pl.BlockSpec((1, O), lambda i: (0, 0)),    # b2 (resident)
            ],
            out_specs=pl.BlockSpec((bm, O), lambda i: (i, 0)),
        ),
        compiler_params=pltpu.CompilerParams(
            dimension_semantics=("parallel",),
            vmem_limit_bytes=vmem_limit,
        ),
        cost_estimate=cost,
    )(x_p, w1, b1, w2, b2)

    return out if B_p == B else out[:B]


def init_params(key, n_feature, n_hidden, n_output):
    """torch.nn.Linear-style init (U(+/-1/sqrt(fan_in))); weights stored (in, out)."""
    k1, k2, k3, k4 = jax.random.split(key, 4)
    s1 = 1.0 / jnp.sqrt(jnp.float32(n_feature))
    s2 = 1.0 / jnp.sqrt(jnp.float32(n_hidden))
    w1 = jax.random.uniform(k1, (n_feature, n_hidden), jnp.float32, -s1, s1)
    b1 = jax.random.uniform(k2, (n_hidden,), jnp.float32, -s1, s1)
    w2 = jax.random.uniform(k3, (n_hidden, n_output), jnp.float32, -s2, s2)
    b2 = jax.random.uniform(k4, (n_output,), jnp.float32, -s2, s2)
    return w1, b1, w2, b2


def _reference(x, w1, b1, w2, b2, compute_dtype=jnp.bfloat16):
    # Pure-JAX reference with the same bf16 operand casts / f32 accumulation.
    h = jnp.dot(x.astype(compute_dtype), w1.astype(compute_dtype),
                preferred_element_type=jnp.float32)
    h = jnp.maximum(h + b1.reshape(1, -1), 0.0)
    y = jnp.dot(h.astype(compute_dtype), w2.astype(compute_dtype),
                preferred_element_type=jnp.float32)
    return y + b2.reshape(1, -1)


if __name__ == "__main__":
    key = jax.random.PRNGKey(0)

    # Small shapes consistent with Net(n_feature, n_hidden, n_output).
    batch, n_feature, n_hidden, n_output = 8, 16, 32, 4
    kx, kp, kx2 = jax.random.split(key, 3)
    x = jax.random.normal(kx, (batch, n_feature), jnp.float32)
    w1, b1, w2, b2 = init_params(kp, n_feature, n_hidden, n_output)
    params = prepare_params(w1, b1, w2, b2)   # one-time cast (hoisted)

    out = jax.block_until_ready(net_forward(x, *params))
    ref = _reference(x, w1, b1, w2, b2)
    assert out.shape == (batch, n_output)
    assert jnp.allclose(out, ref, atol=2e-2, rtol=2e-2), \
        float(jnp.max(jnp.abs(out - ref)))

    # Larger batch: exercises real batch tiling (bm=1024 -> 4 pipelined grid
    # steps, shardable across v7x's two TensorCores).
    big_batch = 4096
    xb = jax.random.normal(kx2, (big_batch, n_feature), jnp.float32)
    out_b = jax.block_until_ready(net_forward(xb, *params))
    ref_b = _reference(xb, w1, b1, w2, b2)
    assert out_b.shape == (big_batch, n_output)
    assert jnp.allclose(out_b, ref_b, atol=2e-2, rtol=2e-2), \
        float(jnp.max(jnp.abs(out_b - ref_b)))

    print("KERNEL_OK")
</pallas_src>

<mosaic_0001>
module attributes {stable_mosaic.version = 11 : i64} {
  func.func @net_kernel(%arg0: i32, %arg1: memref<8x16xf32, #tpu.memory_space<vmem>>, %arg2: memref<16x32xbf16, #tpu.memory_space<vmem>>, %arg3: memref<1x32xf32, #tpu.memory_space<vmem>>, %arg4: memref<32x4xbf16, #tpu.memory_space<vmem>>, %arg5: memref<1x4xf32, #tpu.memory_space<vmem>>, %arg6: memref<8x4xf32, #tpu.memory_space<vmem>>) attributes {dimension_semantics = [#tpu.dimension_semantics<parallel>], iteration_bounds = array<i64: 1>, scalar_prefetch = 0 : i64, scratch_operands = 0 : i64, tpu.core_type = #tpu.core_type<tc>, window_params = [{transform_indices = @transform_0, window_bounds = array<i64: 8, 16>}, {pipeline_mode = #tpu.pipeline_mode<synchronous>, transform_indices = @transform_1, window_bounds = array<i64: 16, 32>}, {pipeline_mode = #tpu.pipeline_mode<synchronous>, transform_indices = @transform_2, window_bounds = array<i64: 1, 32>}, {pipeline_mode = #tpu.pipeline_mode<synchronous>, transform_indices = @transform_3, window_bounds = array<i64: 32, 4>}, {pipeline_mode = #tpu.pipeline_mode<synchronous>, transform_indices = @transform_4, window_bounds = array<i64: 1, 4>}, {transform_indices = @transform_5, window_bounds = array<i64: 8, 4>}]} {
    %c0 = arith.constant 0 : index
    %c0_0 = arith.constant 0 : index
    %0 = vector.load %arg1[%c0, %c0_0] : memref<8x16xf32, #tpu.memory_space<vmem>>, vector<8x16xf32>
    %1 = arith.truncf %0 : vector<8x16xf32> to vector<8x16xbf16>
    %c0_1 = arith.constant 0 : index
    %c0_2 = arith.constant 0 : index
    %2 = vector.load %arg2[%c0_1, %c0_2] : memref<16x32xbf16, #tpu.memory_space<vmem>>, vector<16x32xbf16>
    %cst = arith.constant dense<0.000000e+00> : vector<8x32xf32>
    %3 = tpu.matmul %1, %2, %cst {dimension_numbers = #tpu.dot_dimension_numbers<[1], [0], [0], [1], [0, 0, 1, 1], [], []>} : vector<8x16xbf16>, vector<16x32xbf16>, vector<8x32xf32> -> vector<8x32xf32>
    %c0_3 = arith.constant 0 : index
    %c0_4 = arith.constant 0 : index
    %4 = vector.load %arg3[%c0_3, %c0_4] : memref<1x32xf32, #tpu.memory_space<vmem>>, vector<1x32xf32>
    %5 = vector.broadcast %4 : vector<1x32xf32> to vector<8x32xf32>
    %6 = arith.addf %3, %5 : vector<8x32xf32>
    %cst_5 = arith.constant 0.000000e+00 : f32
    %7 = vector.broadcast %cst_5 : f32 to vector<8x32xf32>
    %8 = arith.maximumf %6, %7 : vector<8x32xf32>
    %9 = arith.truncf %8 : vector<8x32xf32> to vector<8x32xbf16>
    %c0_6 = arith.constant 0 : index
    %c0_7 = arith.constant 0 : index
    %10 = vector.load %arg4[%c0_6, %c0_7] : memref<32x4xbf16, #tpu.memory_space<vmem>>, vector<32x4xbf16>
    %cst_8 = arith.constant dense<0.000000e+00> : vector<8x4xf32>
    %11 = tpu.matmul %9, %10, %cst_8 {dimension_numbers = #tpu.dot_dimension_numbers<[1], [0], [0], [1], [0, 0, 1, 1], [], []>} : vector<8x32xbf16>, vector<32x4xbf16>, vector<8x4xf32> -> vector<8x4xf32>
    %c0_9 = arith.constant 0 : index
    %c0_10 = arith.constant 0 : index
    %12 = vector.load %arg5[%c0_9, %c0_10] : memref<1x4xf32, #tpu.memory_space<vmem>>, vector<1x4xf32>
    %13 = vector.broadcast %12 : vector<1x4xf32> to vector<8x4xf32>
    %14 = arith.addf %11, %13 : vector<8x4xf32>
    %c0_11 = arith.constant 0 : index
    %c0_12 = arith.constant 0 : index
    %15 = vector.load %arg6[%c0_11, %c0_12] : memref<8x4xf32, #tpu.memory_space<vmem>>, vector<8x4xf32>
    tpu.vector_store %arg6[%c0_11, %c0_12], %14 {strides = array<i32>} : memref<8x4xf32, #tpu.memory_space<vmem>>, vector<8x4xf32>,
    return
  }
  func.func @transform_0(%arg0: i32) -> (i32, i32) {
    %c0_i32 = arith.constant 0 : i32
    %c0_i32_0 = arith.constant 0 : i32
    return %arg0, %c0_i32 : i32, i32
  }
  func.func @transform_1(%arg0: i32) -> (i32, i32) {
    %c0_i32 = arith.constant 0 : i32
    %c0_i32_0 = arith.constant 0 : i32
    %c0_i32_1 = arith.constant 0 : i32
    return %c0_i32, %c0_i32_0 : i32, i32
  }
  func.func @transform_2(%arg0: i32) -> (i32, i32) {
    %c0_i32 = arith.constant 0 : i32
    %c0_i32_0 = arith.constant 0 : i32
    %c0_i32_1 = arith.constant 0 : i32
    return %c0_i32, %c0_i32_0 : i32, i32
  }
  func.func @transform_3(%arg0: i32) -> (i32, i32) {
    %c0_i32 = arith.constant 0 : i32
    %c0_i32_0 = arith.constant 0 : i32
    %c0_i32_1 = arith.constant 0 : i32
    return %c0_i32, %c0_i32_0 : i32, i32
  }
  func.func @transform_4(%arg0: i32) -> (i32, i32) {
    %c0_i32 = arith.constant 0 : i32
    %c0_i32_0 = arith.constant 0 : i32
    %c0_i32_1 = arith.constant 0 : i32
    return %c0_i32, %c0_i32_0 : i32, i32
  }
  func.func @transform_5(%arg0: i32) -> (i32, i32) {
    %c0_i32 = arith.constant 0 : i32
    %c0_i32_0 = arith.constant 0 : i32
    return %arg0, %c0_i32 : i32, i32
  }
}

</mosaic_0001>

<llo_original>
// kernel: net_forward.1
$region0: #{net_forward.1}
  #allocation0 [shape = 'u32[]', space=smem, size = 0x4, offset = 0x4, fixed_abs, tag = 'smem constant byte address 0x4 - core index']
  #allocation1 [shape = 'u32[144,128]{1,0:T(1,128)}', space=vmem, size = 0x12000, scoped, tag = 'internal scratch']
  %s0 = inlined_call_operand.vmem [shape: f32[8,16], index: 0, kind: input, shape index: {}]
  %s1 = inlined_call_operand.vmem [shape: bf16[16,32], index: 1, kind: input, shape index: {}]
  %s2 = inlined_call_operand.vmem [shape: f32[1,32], index: 2, kind: input, shape index: {}]
  %s3 = inlined_call_operand.vmem [shape: bf16[32,4], index: 3, kind: input, shape index: {}]
  %s4 = inlined_call_operand.vmem [shape: f32[1,4], index: 4, kind: input, shape index: {}]
  %s5 = inlined_call_operand.vmem [shape: f32[8,4], index: 5, kind: output, shape index: {}]
  %s6 = sld [smem:[#allocation0]]
  $region30: #{net_forward.1} parent=0
    _
  %s8 = ssub.s32 1, %s6
  %s9 = scalar_select 0, %s8, %s6
  // Predicated region
  $region2: #{net_forward.1} parent=0 // pred_check
    _
  $region3: #{net_forward.1} parent=0 // pred_check_branch
    %11 = sbr.rel (0) target = $region5
  $region4: #{net_forward.1} parent=0 // pred_region
    _
  $region5: #{net_forward.1} parent=0 // pred_fallthru
    _
  // Predicated region
  $region6: #{net_forward.1} parent=0 // pred_check
    _
  $region7: #{net_forward.1} parent=0 // pred_check_branch
    %13 = sbr.rel (0) target = $region9
  $region8: #{net_forward.1} parent=0 // pred_region
    _
  $region9: #{net_forward.1} parent=0 // pred_fallthru
    _
  // Predicated region
  $region10: #{net_forward.1} parent=0 // pred_check
    _
  $region11: #{net_forward.1} parent=0 // pred_check_branch
    %15 = sbr.rel (0) target = $region13
  $region12: #{net_forward.1} parent=0 // pred_region
    _
  $region13: #{net_forward.1} parent=0 // pred_fallthru
    _
  // Predicated region
  $region14: #{net_forward.1} parent=0 // pred_check
    _
  $region15: #{net_forward.1} parent=0 // pred_check_branch
    %17 = sbr.rel (0) target = $region17
  $region16: #{net_forward.1} parent=0 // pred_region
    _
  $region17: #{net_forward.1} parent=0 // pred_fallthru
    _
  // Predicated region
  $region18: #{net_forward.1} parent=0 // pred_check
    _
  $region19: #{net_forward.1} parent=0 // pred_check_branch
    %19 = sbr.rel (0) target = $region21
  $region20: #{net_forward.1} parent=0 // pred_region
    _
  $region21: #{net_forward.1} parent=0 // pred_fallthru
    _
  %v21 = vld [vmem:[%s0] sm:$0xff]
  %v22 = vpack.c.bf16 %v21, %v21
  %v23 = vld [vmem:[%s1] sm:$0xf]
  %v24 = vld [vmem:[%s1 + $0x4] sm:$0xf]
  %v25 = vld [vmem:[%s2] sm:$0x1]
  %v27 = vlaneseq
  %v28 = vshrl.u32 %v27, 7
  %v29 = vsub.s32 0, %v28
  %v30 = vrot.slane %v25, %v29
  %v34 = vunpack.c.l.b16 %v23
  %v35 = vunpack.c.l.b16 %v24
  %v36 = vpack.c.b16 %v35, %v34
  %vm38 = vcmask 130048
  %v40 = vsel %vm38, %v22, 0
  %42 = vmatprep.subr.bf16.mxu0 0
  %43 = vmatpush1.bf16.msra.mxu0 %v36
  %44 = vmatprep.subr.bf16.mxu0 0
  %45 = vmatpush1.bf16.msra.mxu0 0
  %46 = vmatprep.subr.bf16.mxu0 0
  %47 = vmatpush1.bf16.msra.mxu0 0
  %48 = vmatprep.subr.bf16.mxu0 0
  %49 = vmatpush1.bf16.msra.mxu0 0
  %50 = vmatprep.subr.bf16.mxu0 0
  %51 = vmatpush1.bf16.msra.mxu0 0
  %52 = vmatprep.subr.bf16.mxu0 0
  %53 = vmatpush1.bf16.msra.mxu0 0
  %54 = vmatprep.subr.bf16.mxu0 0
  %55 = vmatpush1.bf16.msra.mxu0 0
  %56 = vmatprep.subr.bf16.mxu0 0
  %57 = vmatpush1.bf16.msra.mxu0 0
  %58 = vmatprep.subr.bf16.mxu0 0
  %59 = vmatpush1.bf16.msra.mxu0 0
  %60 = vmatprep.subr.bf16.mxu0 0
  %61 = vmatpush1.bf16.msra.mxu0 0
  %62 = vmatprep.subr.bf16.mxu0 0
  %63 = vmatpush1.bf16.msra.mxu0 0
  %64 = vmatprep.subr.bf16.mxu0 0
  %65 = vmatpush1.bf16.msra.mxu0 0
  %66 = vmatprep.subr.bf16.mxu0 0
  %67 = vmatpush1.bf16.msra.mxu0 0
  %68 = vmatprep.subr.bf16.mxu0 0
  %69 = vmatpush1.bf16.msra.mxu0 0
  %70 = vmatprep.subr.bf16.mxu0 0
  %71 = vmatpush1.bf16.msra.mxu0 0
  %72 = vmatprep.subr.bf16.mxu0 0
  %73 = vmatpush1.bf16.msra.mxu0 0
  %74 = vmatprep.mubr.bf16.mxu0 0
  %75 = vmatmul.mubr.bf16.gmra.mrb[0].mxu0 %v40
  %v76 = vpop.f32.mrb[0].mxu0
  %v77 = vadd.f32 %v30, %v76
  %v78 = vpop.f32.mrb[0].mxu0
  %v79 = vpop.f32.mrb[0].mxu0
  %v80 = vpop.f32.mrb[0].mxu0
  %81 = vdwg.mxu0
  %v82 = vmax.f32 %v77, 0.0
  %v83 = vpack.c.bf16 %v82, %v82
  %v84 = vld [vmem:[%s3] sm:$0xf]
  %v85 = vld [vmem:[%s3 + $0x4] sm:$0xf]
  %v86 = vld [vmem:[%s3 + $0x8] sm:$0xf]
  %v87 = vld [vmem:[%s3 + $0xc] sm:$0xf]
  %v88 = vld [vmem:[%s4] sm:$0x1]
  %v90 = vlaneseq
  %v91 = vshrl.u32 %v90, 7
  %v92 = vsub.s32 0, %v91
  %v93 = vrot.slane %v88, %v92
  %v99 = vunpack.c.l.b16 %v84
  %v100 = vunpack.c.l.b16 %v85
  %v101 = vunpack.c.l.b16 %v86
  %v102 = vunpack.c.l.b16 %v87
  %v103 = vpack.c.b16 %v100, %v99
  %v104 = vpack.c.b16 %v102, %v101
  %vm107 = vcmask 261120
  %v109 = vsel %vm107, %v83, 0
  %111 = vmatprep.subr.bf16.mxu0 0
  %112 = vmatpush1.bf16.msra.mxu0 %v103
  %113 = vmatprep.subr.bf16.mxu0 0
  %114 = vmatpush1.bf16.msra.mxu0 %v104
  %115 = vmatprep.subr.bf16.mxu0 0
  %116 = vmatpush1.bf16.msra.mxu0 0
  %117 = vmatprep.subr.bf16.mxu0 0
  %118 = vmatpush1.bf16.msra.mxu0 0
  %119 = vmatprep.subr.bf16.mxu0 0
  %120 = vmatpush1.bf16.msra.mxu0 0
  %121 = vmatprep.subr.bf16.mxu0 0
  %122 = vmatpush1.bf16.msra.mxu0 0
  %123 = vmatprep.subr.bf16.mxu0 0
  %124 = vmatpush1.bf16.msra.mxu0 0
  %125 = vmatprep.subr.bf16.mxu0 0
  %126 = vmatpush1.bf16.msra.mxu0 0
  %127 = vmatprep.subr.bf16.mxu0 0
  %128 = vmatpush1.bf16.msra.mxu0 0
  %129 = vmatprep.subr.bf16.mxu0 0
  %130 = vmatpush1.bf16.msra.mxu0 0
  %131 = vmatprep.subr.bf16.mxu0 0
  %132 = vmatpush1.bf16.msra.mxu0 0
  %133 = vmatprep.subr.bf16.mxu0 0
  %134 = vmatpush1.bf16.msra.mxu0 0
  %135 = vmatprep.subr.bf16.mxu0 0
  %136 = vmatpush1.bf16.msra.mxu0 0
  %137 = vmatprep.subr.bf16.mxu0 0
  %138 = vmatpush1.bf16.msra.mxu0 0
  %139 = vmatprep.subr.bf16.mxu0 0
  %140 = vmatpush1.bf16.msra.mxu0 0
  %141 = vmatprep.subr.bf16.mxu0 0
  %142 = vmatpush1.bf16.msra.mxu0 0
  %143 = vmatprep.mubr.bf16.mxu0 0
  %144 = vmatmul.mubr.bf16.gmra.mrb[0].mxu0 %v109
  %v145 = vpop.f32.mrb[0].mxu0
  %v146 = vadd.f32 %v93, %v145
  %v147 = vpop.f32.mrb[0].mxu0
  %v148 = vpop.f32.mrb[0].mxu0
  %v149 = vpop.f32.mrb[0].mxu0
  %150 = vdwg.mxu0
  %vm151 = vcmask 31744
  %152 = vst.msk [vmem:[%s5] sm:$0xff] %vm151, %v146
  // Predicated region
  $region22: #{net_forward.1} parent=0 // pred_check
    _
  $region23: #{net_forward.1} parent=0 // pred_check_branch
    %154 = sbr.rel (0) target = $region25
  $region24: #{net_forward.1} parent=0 // pred_region
    _
  $region25: #{net_forward.1} parent=0 // pred_fallthru
    _
  // Predicated region
  $region26: #{net_forward.1} parent=0 // pred_check
    _
  $region27: #{net_forward.1} parent=0 // pred_check_branch
    %156 = sbr.rel (0) target = $region29
  $region28: #{net_forward.1} parent=0 // pred_region
    _
  $region29: #{net_forward.1} parent=0 // pred_fallthru
    _

</llo_original>
